<compile_context>
chip_gen: v7x
topology: tpu7x:2x2x1
jax: 0.10.0
libtpu: 0.0.40
codegen_flags: <defaults>
</compile_context>

<pallas_src>
import math
from functools import partial

import jax
import jax.numpy as jnp
from jax import lax
from jax.experimental import pallas as pl
from jax.experimental.pallas import tpu as pltpu


# ----------------------------------------------------------------------------
# Buffer construction (mirrors BBPositionalEncoding.__init__, args pre-swapped)
# ----------------------------------------------------------------------------
def build_pe(max_size, embedding_dim):
    pe = jnp.zeros((max_size, embedding_dim), jnp.float32)
    position = jnp.arange(max_size, dtype=jnp.float32)[:, None]          # (max_size, 1)
    div_freq = jnp.exp(
        jnp.arange(0, embedding_dim, 2, dtype=jnp.float32)
        * -(math.log(10000.0) / embedding_dim)
    )                                                                     # (ceil(E/2),)
    pe = pe.at[:, 0::2].set(jnp.sin(position * div_freq))
    # TODO(synk): reference `pe[0, 1::2] = cos(position * div_freq)` is
    # shape-ambiguous in PyTorch; keep the broadcast-valid row-0 reading.
    pe = pe.at[0, 1::2].set(jnp.cos(position[0] * div_freq)[: embedding_dim // 2])
    return pe[None]                                                       # (1, max_size, E)


# ----------------------------------------------------------------------------
# Fused Pallas kernel: pe-add + Linear(4,D) + Linear(D,D), lane-packed output
# ----------------------------------------------------------------------------
def _bbox_fused_kernel(x_ref, pe_ref, w1_ref, b1_ref, w2_ref, b2_ref, o_ref,
                       *, batch, pack, feat):
    # x_ref : (NP, pack*feat)   flattened rows, `pack` rows packed per vreg row
    # pe_ref: (S//pack, pack*feat)
    # w1_ref: (D, feat)  b1_ref: (1, D)  w2_ref: (D, D)  b2_ref: (1, D)
    # o_ref : (NP, pack*D)      lane-dense (128-wide when pack*D == 128)
    w1 = w1_ref[...]
    w2 = w2_ref[...]

    # Fold the two Linear layers (no activation between them in the reference):
    #   out = ((x+pe) @ W1^T + b1) @ W2^T + b2 = (x+pe) @ Wc + bc
    w_comb = lax.dot_general(w1, w2, (((0,), (1,)), ((), ())),
                             preferred_element_type=jnp.float32)          # (feat, D)
    b_comb = lax.dot_general(b1_ref[...], w2, (((1,), (1,)), ((), ())),
                             preferred_element_type=jnp.float32)
    b_comb = b_comb + b2_ref[...]                                         # (1, D)

    # Block-diagonal packed weight: W_big[j*feat+f, j*D+e] = w_comb[f, e].
    if pack == 1:
        w_big = w_comb
        b_big = b_comb
    else:
        zeros = jnp.zeros_like(w_comb)
        rows = [
            jnp.concatenate(
                [w_comb if j == i else zeros for j in range(pack)], axis=1)
            for i in range(pack)
        ]
        w_big = jnp.concatenate(rows, axis=0)                             # (pack*feat, pack*D)
        b_big = jnp.concatenate([b_comb] * pack, axis=1)                  # (1, pack*D)

    # Batch broadcast of pe in-kernel (tiny sublane concat, no HBM tile).
    pe = pe_ref[...]
    if batch > 1:
        pe = jnp.concatenate([pe] * batch, axis=0)                        # (NP, pack*feat)

    y = x_ref[...] + pe                                                   # (NP, pack*feat)
    out = jnp.dot(y, w_big, preferred_element_type=jnp.float32) + b_big   # (NP, pack*D)
    o_ref[...] = out.astype(o_ref.dtype)


def bbox_spatial_embedding(x, pe_full, w1, b1, w2, b2):
    """Forward pass of BoundingBoxSpatialEmbeddingModel.

    x:       (B, S, 4) float32
    pe_full: (1, S, 4) float32 buffer (reference broadcast needs S == embedding_dim)
    w1: (D, 4), b1: (D,), w2: (D, D), b2: (D,)
    returns  (B, S, D)
    """
    B, S, F = x.shape
    D = w1.shape[0]
    assert F == 4, "bounding boxes must have 4 coordinates"
    assert pe_full.shape == (1, S, F), (
        "reference broadcasting requires S == embedding_dim and max_len == 4; "
        f"got pe {pe_full.shape}, x {x.shape}"
    )

    # Lane-packing factor: pack P logical rows (D output lanes each) per vreg row.
    pack = 128 // D if (D <= 128 and 128 % D == 0) else 1
    if S % pack != 0:
        pack = 1
    num_packed = (B * S) // pack

    # Free row-major reshapes only (no compute, no extra HBM round trips).
    x2d = x.reshape(num_packed, pack * F)
    pe2d = pe_full.reshape(S // pack, pack * F)
    b1_2d = b1.reshape(1, D)
    b2_2d = b2.reshape(1, D)

    kernel = partial(_bbox_fused_kernel, batch=B, pack=pack, feat=F)

    out2d = pl.pallas_call(
        kernel,
        out_shape=jax.ShapeDtypeStruct((num_packed, pack * D), x.dtype),
        grid=(1,),                    # single step: the whole op is launch-bound
        in_specs=[
            pl.BlockSpec((num_packed, pack * F), lambda i: (0, 0)),   # x (packed)
            pl.BlockSpec((S // pack, pack * F), lambda i: (0, 0)),    # pe (packed, per-seq)
            pl.BlockSpec((D, F), lambda i: (0, 0)),                   # W1
            pl.BlockSpec((1, D), lambda i: (0, 0)),                   # b1
            pl.BlockSpec((D, D), lambda i: (0, 0)),                   # W2
            pl.BlockSpec((1, D), lambda i: (0, 0)),                   # b2
        ],
        out_specs=pl.BlockSpec((num_packed, pack * D), lambda i: (0, 0)),
        compiler_params=pltpu.CompilerParams(dimension_semantics=("arbitrary",)),
    )(x2d, pe2d, w1, b1_2d, w2, b2_2d)

    return out2d.reshape(B, S, D)


# ----------------------------------------------------------------------------
# Demo / self-check
# ----------------------------------------------------------------------------
if __name__ == "__main__":
    D = 32          # embedding_dim
    L = 4           # max_len (must be 4 for the reference broadcast to be valid)
    B = 2
    S = D           # seq length must equal embedding_dim (reference broadcast)

    key = jax.random.PRNGKey(0)
    k_x, k_w1, k_b1, k_w2, k_b2 = jax.random.split(key, 5)

    x = jax.random.normal(k_x, (B, S, 4), jnp.float32)

    # nn.Linear-style deterministic init: U(-1/sqrt(fan_in), 1/sqrt(fan_in))
    bound1 = 1.0 / math.sqrt(4.0)
    bound2 = 1.0 / math.sqrt(float(D))
    w1 = jax.random.uniform(k_w1, (D, 4), jnp.float32, -bound1, bound1)
    b1 = jax.random.uniform(k_b1, (D,), jnp.float32, -bound1, bound1)
    w2 = jax.random.uniform(k_w2, (D, D), jnp.float32, -bound2, bound2)
    b2 = jax.random.uniform(k_b2, (D,), jnp.float32, -bound2, bound2)

    # Buffer from BBPositionalEncoding(embedding_dim=D, max_len=L) → class args swapped
    pe_full = build_pe(D, L)   # (1, D, 4)

    fwd = jax.jit(bbox_spatial_embedding)   # single dispatch, reshapes fold away
    out = jax.block_until_ready(fwd(x, pe_full, w1, b1, w2, b2))

    # Plain-JAX reference of the *unfolded* forward pass (same semantics; the
    # in-kernel fold only changes f32 rounding order slightly).
    y_ref = x + pe_full[: x.shape[1]]
    ref = (y_ref @ w1.T + b1) @ w2.T + b2

    assert out.shape == (B, S, D), out.shape
    err = float(jnp.max(jnp.abs(out - ref)))
    assert jnp.allclose(out, ref, atol=1e-3, rtol=1e-3), err
    print("KERNEL_OK")
</pallas_src>

<mosaic_0001>
module attributes {stable_mosaic.version = 11 : i64} {
  func.func @_bbox_fused_kernel(%arg0: i32, %arg1: memref<16x16xf32, #tpu.memory_space<vmem>>, %arg2: memref<8x16xf32, #tpu.memory_space<vmem>>, %arg3: memref<32x4xf32, #tpu.memory_space<vmem>>, %arg4: memref<1x32xf32, #tpu.memory_space<vmem>>, %arg5: memref<32x32xf32, #tpu.memory_space<vmem>>, %arg6: memref<1x32xf32, #tpu.memory_space<vmem>>, %arg7: memref<16x128xf32, #tpu.memory_space<vmem>>) attributes {dimension_semantics = [#tpu.dimension_semantics<arbitrary>], iteration_bounds = array<i64: 1>, scalar_prefetch = 0 : i64, scratch_operands = 0 : i64, tpu.core_type = #tpu.core_type<tc>, window_params = [{pipeline_mode = #tpu.pipeline_mode<synchronous>, transform_indices = @transform_0, window_bounds = array<i64: 16, 16>}, {pipeline_mode = #tpu.pipeline_mode<synchronous>, transform_indices = @transform_1, window_bounds = array<i64: 8, 16>}, {pipeline_mode = #tpu.pipeline_mode<synchronous>, transform_indices = @transform_2, window_bounds = array<i64: 32, 4>}, {pipeline_mode = #tpu.pipeline_mode<synchronous>, transform_indices = @transform_3, window_bounds = array<i64: 1, 32>}, {pipeline_mode = #tpu.pipeline_mode<synchronous>, transform_indices = @transform_4, window_bounds = array<i64: 32, 32>}, {pipeline_mode = #tpu.pipeline_mode<synchronous>, transform_indices = @transform_5, window_bounds = array<i64: 1, 32>}, {pipeline_mode = #tpu.pipeline_mode<synchronous>, transform_indices = @transform_6, window_bounds = array<i64: 16, 128>}]} {
    %c0 = arith.constant 0 : index
    %c0_0 = arith.constant 0 : index
    %0 = vector.load %arg3[%c0, %c0_0] : memref<32x4xf32, #tpu.memory_space<vmem>>, vector<32x4xf32>
    %c0_1 = arith.constant 0 : index
    %c0_2 = arith.constant 0 : index
    %1 = vector.load %arg5[%c0_1, %c0_2] : memref<32x32xf32, #tpu.memory_space<vmem>>, vector<32x32xf32>
    %cst = arith.constant dense<0.000000e+00> : vector<4x32xf32>
    %2 = tpu.matmul %0, %1, %cst {dimension_numbers = #tpu.dot_dimension_numbers<[0], [1], [1], [0], [0, 1, 1, 0], [], []>} : vector<32x4xf32>, vector<32x32xf32>, vector<4x32xf32> -> vector<4x32xf32>
    %c0_3 = arith.constant 0 : index
    %c0_4 = arith.constant 0 : index
    %3 = vector.load %arg4[%c0_3, %c0_4] : memref<1x32xf32, #tpu.memory_space<vmem>>, vector<1x32xf32>
    %cst_5 = arith.constant dense<0.000000e+00> : vector<1x32xf32>
    %4 = tpu.matmul %3, %1, %cst_5 {dimension_numbers = #tpu.dot_dimension_numbers<[1], [1], [0], [0], [0, 0, 1, 0], [], []>} : vector<1x32xf32>, vector<32x32xf32>, vector<1x32xf32> -> vector<1x32xf32>
    %c0_6 = arith.constant 0 : index
    %c0_7 = arith.constant 0 : index
    %5 = vector.load %arg6[%c0_6, %c0_7] : memref<1x32xf32, #tpu.memory_space<vmem>>, vector<1x32xf32>
    %6 = arith.addf %4, %5 : vector<1x32xf32>
    %cst_8 = arith.constant 0.000000e+00 : f32
    %7 = vector.broadcast %cst_8 : f32 to vector<4x32xf32>
    %8 = tpu.concatenate %2, %7, %7, %7 in 1 : vector<4x32xf32>, vector<4x32xf32>, vector<4x32xf32>, vector<4x32xf32> -> vector<4x128xf32>
    %9 = tpu.concatenate %7, %2, %7, %7 in 1 : vector<4x32xf32>, vector<4x32xf32>, vector<4x32xf32>, vector<4x32xf32> -> vector<4x128xf32>
    %10 = tpu.concatenate %7, %7, %2, %7 in 1 : vector<4x32xf32>, vector<4x32xf32>, vector<4x32xf32>, vector<4x32xf32> -> vector<4x128xf32>
    %11 = tpu.concatenate %7, %7, %7, %2 in 1 : vector<4x32xf32>, vector<4x32xf32>, vector<4x32xf32>, vector<4x32xf32> -> vector<4x128xf32>
    %12 = tpu.concatenate %8, %9, %10, %11 in 0 : vector<4x128xf32>, vector<4x128xf32>, vector<4x128xf32>, vector<4x128xf32> -> vector<16x128xf32>
    %13 = tpu.concatenate %6, %6, %6, %6 in 1 : vector<1x32xf32>, vector<1x32xf32>, vector<1x32xf32>, vector<1x32xf32> -> vector<1x128xf32>
    %c0_9 = arith.constant 0 : index
    %c0_10 = arith.constant 0 : index
    %14 = vector.load %arg2[%c0_9, %c0_10] : memref<8x16xf32, #tpu.memory_space<vmem>>, vector<8x16xf32>
    %15 = tpu.concatenate %14, %14 in 0 : vector<8x16xf32>, vector<8x16xf32> -> vector<16x16xf32>
    %c0_11 = arith.constant 0 : index
    %c0_12 = arith.constant 0 : index
    %16 = vector.load %arg1[%c0_11, %c0_12] : memref<16x16xf32, #tpu.memory_space<vmem>>, vector<16x16xf32>
    %17 = arith.addf %16, %15 : vector<16x16xf32>
    %cst_13 = arith.constant dense<0.000000e+00> : vector<16x128xf32>
    %18 = tpu.matmul %17, %12, %cst_13 {dimension_numbers = #tpu.dot_dimension_numbers<[1], [0], [0], [1], [0, 0, 1, 1], [], []>} : vector<16x16xf32>, vector<16x128xf32>, vector<16x128xf32> -> vector<16x128xf32>
    %19 = vector.broadcast %13 : vector<1x128xf32> to vector<16x128xf32>
    %20 = arith.addf %18, %19 : vector<16x128xf32>
    %c0_14 = arith.constant 0 : index
    %c0_15 = arith.constant 0 : index
    %21 = vector.load %arg7[%c0_14, %c0_15] : memref<16x128xf32, #tpu.memory_space<vmem>>, vector<16x128xf32>
    tpu.vector_store %arg7[%c0_14, %c0_15], %20 {strides = array<i32>} : memref<16x128xf32, #tpu.memory_space<vmem>>, vector<16x128xf32>,
    return
  }
  func.func @transform_0(%arg0: i32) -> (i32, i32) {
    %c0_i32 = arith.constant 0 : i32
    %c0_i32_0 = arith.constant 0 : i32
    %c0_i32_1 = arith.constant 0 : i32
    return %c0_i32, %c0_i32_0 : i32, i32
  }
  func.func @transform_1(%arg0: i32) -> (i32, i32) {
    %c0_i32 = arith.constant 0 : i32
    %c0_i32_0 = arith.constant 0 : i32
    %c0_i32_1 = arith.constant 0 : i32
    return %c0_i32, %c0_i32_0 : i32, i32
  }
  func.func @transform_2(%arg0: i32) -> (i32, i32) {
    %c0_i32 = arith.constant 0 : i32
    %c0_i32_0 = arith.constant 0 : i32
    %c0_i32_1 = arith.constant 0 : i32
    return %c0_i32, %c0_i32_0 : i32, i32
  }
  func.func @transform_3(%arg0: i32) -> (i32, i32) {
    %c0_i32 = arith.constant 0 : i32
    %c0_i32_0 = arith.constant 0 : i32
    %c0_i32_1 = arith.constant 0 : i32
    return %c0_i32, %c0_i32_0 : i32, i32
  }
  func.func @transform_4(%arg0: i32) -> (i32, i32) {
    %c0_i32 = arith.constant 0 : i32
    %c0_i32_0 = arith.constant 0 : i32
    %c0_i32_1 = arith.constant 0 : i32
    return %c0_i32, %c0_i32_0 : i32, i32
  }
  func.func @transform_5(%arg0: i32) -> (i32, i32) {
    %c0_i32 = arith.constant 0 : i32
    %c0_i32_0 = arith.constant 0 : i32
    %c0_i32_1 = arith.constant 0 : i32
    return %c0_i32, %c0_i32_0 : i32, i32
  }
  func.func @transform_6(%arg0: i32) -> (i32, i32) {
    %c0_i32 = arith.constant 0 : i32
    %c0_i32_0 = arith.constant 0 : i32
    %c0_i32_1 = arith.constant 0 : i32
    return %c0_i32, %c0_i32_0 : i32, i32
  }
}

</mosaic_0001>

<llo_original>
// kernel: bbox_spatial_embedding.1
$region0: #{bbox_spatial_embedding.1}
  #allocation0 [shape = 'u32[]', space=smem, size = 0x4, offset = 0x4, fixed_abs, tag = 'smem constant byte address 0x4 - core index']
  #allocation1 [shape = 'u32[144,128]{1,0:T(1,128)}', space=vmem, size = 0x12000, scoped, tag = 'internal scratch']
  %s0 = inlined_call_operand.vmem [shape: f32[16,16], index: 0, kind: input, shape index: {}]
  %s1 = inlined_call_operand.vmem [shape: f32[8,16], index: 1, kind: input, shape index: {}]
  %s2 = inlined_call_operand.vmem [shape: f32[32,4], index: 2, kind: input, shape index: {}]
  %s3 = inlined_call_operand.vmem [shape: f32[1,32], index: 3, kind: input, shape index: {}]
  %s4 = inlined_call_operand.vmem [shape: f32[32,32], index: 4, kind: input, shape index: {}]
  %s5 = inlined_call_operand.vmem [shape: f32[1,32], index: 5, kind: input, shape index: {}]
  %s6 = inlined_call_operand.vmem [shape: f32[16,128], index: 6, kind: output, shape index: {}]
  %s7 = sld [smem:[#allocation0]]
  $region34: #{bbox_spatial_embedding.1} parent=0
    _
  %s9 = ssub.s32 1, %s7
  %s10 = scalar_select 0, %s9, %s7
  // Predicated region
  $region2: #{bbox_spatial_embedding.1} parent=0 // pred_check
    _
  $region3: #{bbox_spatial_embedding.1} parent=0 // pred_check_branch
    %12 = sbr.rel (0) target = $region5
  $region4: #{bbox_spatial_embedding.1} parent=0 // pred_region
    _
  $region5: #{bbox_spatial_embedding.1} parent=0 // pred_fallthru
    _
  // Predicated region
  $region6: #{bbox_spatial_embedding.1} parent=0 // pred_check
    _
  $region7: #{bbox_spatial_embedding.1} parent=0 // pred_check_branch
    %14 = sbr.rel (0) target = $region9
  $region8: #{bbox_spatial_embedding.1} parent=0 // pred_region
    _
  $region9: #{bbox_spatial_embedding.1} parent=0 // pred_fallthru
    _
  // Predicated region
  $region10: #{bbox_spatial_embedding.1} parent=0 // pred_check
    _
  $region11: #{bbox_spatial_embedding.1} parent=0 // pred_check_branch
    %16 = sbr.rel (0) target = $region13
  $region12: #{bbox_spatial_embedding.1} parent=0 // pred_region
    _
  $region13: #{bbox_spatial_embedding.1} parent=0 // pred_fallthru
    _
  // Predicated region
  $region14: #{bbox_spatial_embedding.1} parent=0 // pred_check
    _
  $region15: #{bbox_spatial_embedding.1} parent=0 // pred_check_branch
    %18 = sbr.rel (0) target = $region17
  $region16: #{bbox_spatial_embedding.1} parent=0 // pred_region
    _
  $region17: #{bbox_spatial_embedding.1} parent=0 // pred_fallthru
    _
  // Predicated region
  $region18: #{bbox_spatial_embedding.1} parent=0 // pred_check
    _
  $region19: #{bbox_spatial_embedding.1} parent=0 // pred_check_branch
    %20 = sbr.rel (0) target = $region21
  $region20: #{bbox_spatial_embedding.1} parent=0 // pred_region
    _
  $region21: #{bbox_spatial_embedding.1} parent=0 // pred_fallthru
    _
  // Predicated region
  $region22: #{bbox_spatial_embedding.1} parent=0 // pred_check
    _
  $region23: #{bbox_spatial_embedding.1} parent=0 // pred_check_branch
    %22 = sbr.rel (0) target = $region25
  $region24: #{bbox_spatial_embedding.1} parent=0 // pred_region
    _
  $region25: #{bbox_spatial_embedding.1} parent=0 // pred_fallthru
    _
  %v23 = vld [vmem:[%s2] sm:$0xff]
  %v24 = vld [vmem:[%s2 + $0x8] sm:$0xff]
  %v25 = vld [vmem:[%s2 + $0x10] sm:$0xff]
  %v26 = vld [vmem:[%s2 + $0x18] sm:$0xff]
  %v27 = vld [vmem:[%s4] sm:$0xff]
  %v28 = vld [vmem:[%s4 + $0x8] sm:$0xff]
  %v29 = vld [vmem:[%s4 + $0x10] sm:$0xff]
  %v30 = vld [vmem:[%s4 + $0x18] sm:$0xff]
  %31 = vxpose.xlu0.b32.start [1/16] %v23, 128
  %32 = vxpose.xlu0.b32.cont [2/16] %v24, 128
  %33 = vxpose.xlu0.b32.cont [3/16] %v25, 128
  %34 = vxpose.xlu0.b32.cont [4/16] %v26, 128
  %35 = vxpose.xlu0.b32.cont [5/16] 0.0, 128
  %36 = vxpose.xlu0.b32.cont [6/16] 0.0, 128
  %37 = vxpose.xlu0.b32.cont [7/16] 0.0, 128
  %38 = vxpose.xlu0.b32.cont [8/16] 0.0, 128
  %39 = vxpose.xlu0.b32.cont [9/16] 0.0, 128
  %40 = vxpose.xlu0.b32.cont [10/16] 0.0, 128
  %41 = vxpose.xlu0.b32.cont [11/16] 0.0, 128
  %42 = vxpose.xlu0.b32.cont [12/16] 0.0, 128
  %43 = vxpose.xlu0.b32.cont [13/16] 0.0, 128
  %44 = vxpose.xlu0.b32.cont [14/16] 0.0, 128
  %45 = vxpose.xlu0.b32.cont [15/16] 0.0, 128
  %46 = vxpose.xlu0.b32.end [16/16] 0.0, 128
  %v47 = vpop.trf.xlu0
  %v48 = vpop.trf.xlu0
  %v49 = vpop.trf.xlu0
  %v50 = vpop.trf.xlu0
  %v51 = vpop.trf.xlu0
  %v52 = vpop.trf.xlu0
  %v53 = vpop.trf.xlu0
  %v54 = vpop.trf.xlu0
  %v55 = vpop.trf.xlu0
  %v56 = vpop.trf.xlu0
  %v57 = vpop.trf.xlu0
  %v58 = vpop.trf.xlu0
  %v59 = vpop.trf.xlu0
  %v60 = vpop.trf.xlu0
  %v61 = vpop.trf.xlu0
  %v62 = vpop.trf.xlu0
  %vm63 = vcmask 261120
  %v65 = vsel %vm63, %v47, 0
  %v68 = vsel %vm63, %v27, 0
  %v71 = vsel %vm63, %v28, 0
  %v74 = vsel %vm63, %v29, 0
  %v77 = vsel %vm63, %v30, 0
  %79 = vmatprep.subr.mxu0 0.0
  %80 = vmatpush1.xpose.msra.mxu0 %v68
  %81 = vmatprep.subr.mxu0 0.0
  %82 = vmatpush1.xpose.msra.mxu0 %v71
  %83 = vmatprep.subr.mxu0 0.0
  %84 = vmatpush1.xpose.msra.mxu0 %v74
  %85 = vmatprep.subr.mxu0 0.0
  %86 = vmatpush1.xpose.msra.mxu0 %v77
  %87 = vmatprep.subr.mxu0 0.0
  %88 = vmatpush1.xpose.msra.mxu0 0.0
  %89 = vmatprep.subr.mxu0 0.0
  %90 = vmatpush1.xpose.msra.mxu0 0.0
  %91 = vmatprep.subr.mxu0 0.0
  %92 = vmatpush1.xpose.msra.mxu0 0.0
  %93 = vmatprep.subr.mxu0 0.0
  %94 = vmatpush1.xpose.msra.mxu0 0.0
  %95 = vmatprep.subr.mxu0 0.0
  %96 = vmatpush1.xpose.msra.mxu0 0.0
  %97 = vmatprep.subr.mxu0 0.0
  %98 = vmatpush1.xpose.msra.mxu0 0.0
  %99 = vmatprep.subr.mxu0 0.0
  %100 = vmatpush1.xpose.msra.mxu0 0.0
  %101 = vmatprep.subr.mxu0 0.0
  %102 = vmatpush1.xpose.msra.mxu0 0.0
  %103 = vmatprep.subr.mxu0 0.0
  %104 = vmatpush1.xpose.msra.mxu0 0.0
  %105 = vmatprep.subr.mxu0 0.0
  %106 = vmatpush1.xpose.msra.mxu0 0.0
  %107 = vmatprep.subr.mxu0 0.0
  %108 = vmatpush1.xpose.msra.mxu0 0.0
  %109 = vmatprep.subr.mxu0 0.0
  %110 = vmatpush1.xpose.msra.mxu0 0.0
  %111 = vmatprep.subr.mxu0 0.0
  %112 = vmatpush1.xpose.msra.mxu0 0.0
  %113 = vmatprep.subr.mxu0 0.0
  %114 = vmatpush1.xpose.msra.mxu0 0.0
  %115 = vmatprep.subr.mxu0 0.0
  %116 = vmatpush1.xpose.msra.mxu0 0.0
  %117 = vmatprep.subr.mxu0 0.0
  %118 = vmatpush1.xpose.msra.mxu0 0.0
  %119 = vmatprep.subr.mxu0 0.0
  %120 = vmatpush1.xpose.msra.mxu0 0.0
  %121 = vmatprep.subr.mxu0 0.0
  %122 = vmatpush1.xpose.msra.mxu0 0.0
  %123 = vmatprep.subr.mxu0 0.0
  %124 = vmatpush1.xpose.msra.mxu0 0.0
  %125 = vmatprep.subr.mxu0 0.0
  %126 = vmatpush1.xpose.msra.mxu0 0.0
  %127 = vmatprep.subr.mxu0 0.0
  %128 = vmatpush1.xpose.msra.mxu0 0.0
  %129 = vmatprep.subr.mxu0 0.0
  %130 = vmatpush1.xpose.msra.mxu0 0.0
  %131 = vmatprep.subr.mxu0 0.0
  %132 = vmatpush1.xpose.msra.mxu0 0.0
  %133 = vmatprep.subr.mxu0 0.0
  %134 = vmatpush1.xpose.msra.mxu0 0.0
  %135 = vmatprep.subr.mxu0 0.0
  %136 = vmatpush1.xpose.msra.mxu0 0.0
  %137 = vmatprep.subr.mxu0 0.0
  %138 = vmatpush1.xpose.msra.mxu0 0.0
  %139 = vmatprep.subr.mxu0 0.0
  %140 = vmatpush1.xpose.msra.mxu0 0.0
  %141 = vmatprep.subr.mxu0 0.0
  %142 = vmatpush1.xpose.msra.mxu0 0.0
  %143 = vmatprep.mubr.f32.mxu0 0.0
  %144 = vmatmul.mubr.f32.gmra.mrb[0].mxu0 %v65
  %v145 = vpop.f32.mrb[0].mxu0
  %v146 = vadd.f32 0.0, %v145
  %v147 = vpop.f32.mrb[0].mxu0
  %148 = vdwg.mxu0
  %v149 = vld [vmem:[%s3] sm:$0x1]
  %v150 = vld [vmem:[%s5] sm:$0x1]
  %v152 = vsel %vm63, %v149, 0
  %154 = vmatprep.subr.mxu0 0.0
  %155 = vmatpush1.xpose.msra.mxu0 %v68
  %156 = vmatprep.subr.mxu0 0.0
  %157 = vmatpush1.xpose.msra.mxu0 %v71
  %158 = vmatprep.subr.mxu0 0.0
  %159 = vmatpush1.xpose.msra.mxu0 %v74
  %160 = vmatprep.subr.mxu0 0.0
  %161 = vmatpush1.xpose.msra.mxu0 %v77
  %162 = vmatprep.subr.mxu0 0.0
  %163 = vmatpush1.xpose.msra.mxu0 0.0
  %164 = vmatprep.subr.mxu0 0.0
  %165 = vmatpush1.xpose.msra.mxu0 0.0
  %166 = vmatprep.subr.mxu0 0.0
  %167 = vmatpush1.xpose.msra.mxu0 0.0
  %168 = vmatprep.subr.mxu0 0.0
  %169 = vmatpush1.xpose.msra.mxu0 0.0
  %170 = vmatprep.subr.mxu0 0.0
  %171 = vmatpush1.xpose.msra.mxu0 0.0
  %172 = vmatprep.subr.mxu0 0.0
  %173 = vmatpush1.xpose.msra.mxu0 0.0
  %174 = vmatprep.subr.mxu0 0.0
  %175 = vmatpush1.xpose.msra.mxu0 0.0
  %176 = vmatprep.subr.mxu0 0.0
  %177 = vmatpush1.xpose.msra.mxu0 0.0
  %178 = vmatprep.subr.mxu0 0.0
  %179 = vmatpush1.xpose.msra.mxu0 0.0
  %180 = vmatprep.subr.mxu0 0.0
  %181 = vmatpush1.xpose.msra.mxu0 0.0
  %182 = vmatprep.subr.mxu0 0.0
  %183 = vmatpush1.xpose.msra.mxu0 0.0
  %184 = vmatprep.subr.mxu0 0.0
  %185 = vmatpush1.xpose.msra.mxu0 0.0
  %186 = vmatprep.subr.mxu0 0.0
  %187 = vmatpush1.xpose.msra.mxu0 0.0
  %188 = vmatprep.subr.mxu0 0.0
  %189 = vmatpush1.xpose.msra.mxu0 0.0
  %190 = vmatprep.subr.mxu0 0.0
  %191 = vmatpush1.xpose.msra.mxu0 0.0
  %192 = vmatprep.subr.mxu0 0.0
  %193 = vmatpush1.xpose.msra.mxu0 0.0
  %194 = vmatprep.subr.mxu0 0.0
  %195 = vmatpush1.xpose.msra.mxu0 0.0
  %196 = vmatprep.subr.mxu0 0.0
  %197 = vmatpush1.xpose.msra.mxu0 0.0
  %198 = vmatprep.subr.mxu0 0.0
  %199 = vmatpush1.xpose.msra.mxu0 0.0
  %200 = vmatprep.subr.mxu0 0.0
  %201 = vmatpush1.xpose.msra.mxu0 0.0
  %202 = vmatprep.subr.mxu0 0.0
  %203 = vmatpush1.xpose.msra.mxu0 0.0
  %204 = vmatprep.subr.mxu0 0.0
  %205 = vmatpush1.xpose.msra.mxu0 0.0
  %206 = vmatprep.subr.mxu0 0.0
  %207 = vmatpush1.xpose.msra.mxu0 0.0
  %208 = vmatprep.subr.mxu0 0.0
  %209 = vmatpush1.xpose.msra.mxu0 0.0
  %210 = vmatprep.subr.mxu0 0.0
  %211 = vmatpush1.xpose.msra.mxu0 0.0
  %212 = vmatprep.subr.mxu0 0.0
  %213 = vmatpush1.xpose.msra.mxu0 0.0
  %214 = vmatprep.subr.mxu0 0.0
  %215 = vmatpush1.xpose.msra.mxu0 0.0
  %216 = vmatprep.subr.mxu0 0.0
  %217 = vmatpush1.xpose.msra.mxu0 0.0
  %218 = vmatprep.mubr.f32.mxu0 0.0
  %219 = vmatmul.mubr.f32.gmra.mrb[0].mxu0 %v152
  %v220 = vpop.f32.mrb[0].mxu0
  %v221 = vadd.f32 %v150, %v220
  %v222 = vpop.f32.mrb[0].mxu0
  %223 = vdwg.mxu0
  %v224 = vsel %vm63, %v146, 0.0
  %vm225 = vcmask 523264
  %v226 = vsel %vm225, %v224, 0.0
  %vm227 = vcmask 785408
  %v228 = vsel %vm227, %v226, 0.0
  %230 = vrot.lane.b32.xlu0 %v146, 32
  %v231 = vpop.permute.xlu0 %230
  %v233 = vsel %vm63, 0.0, %v231
  %v234 = vsel %vm225, %v233, 0.0
  %v235 = vsel %vm227, %v234, 0.0
  %236 = vrot.lane.b32.xlu0 %v146, 64
  %v237 = vpop.permute.xlu0 %236
  %v239 = vsel %vm225, 0.0, %v237
  %v240 = vsel %vm227, %v239, 0.0
  %241 = vrot.lane.b32.xlu0 %v146, 96
  %v242 = vpop.permute.xlu0 %241
  %v244 = vsel %vm227, 0.0, %v242
  %v246 = vrot.slane %v235, 4
  %v249 = vrot.slane %v244, 4
  %vm251 = vcmask 1043456
  %v252 = vsel %vm251, %v228, %v246
  %v253 = vsel %vm251, %v240, %v249
  %255 = vrot.lane.b32.xlu0 %v221, 32
  %v256 = vpop.permute.xlu0 %255
  %258 = vrot.lane.b32.xlu0 %v221, 64
  %v259 = vpop.permute.xlu0 %258
  %261 = vrot.lane.b32.xlu0 %v221, 96
  %v262 = vpop.permute.xlu0 %261
  %v264 = vsel %vm63, %v221, %v256
  %v265 = vsel %vm225, %v264, %v259
  %v266 = vsel %vm227, %v265, %v262
  %v267 = vld [vmem:[%s1] sm:$0xff]
  %v268 = vld [vmem:[%s0] sm:$0xff]
  %v269 = vld [vmem:[%s0 + $0x8] sm:$0xff]
  %v270 = vadd.f32 %v268, %v267
  %v271 = vadd.f32 %v269, %v267
  %v272 = vlaneseq
  %v273 = vshrl.u32 %v272, 7
  %v274 = vsub.s32 0, %v273
  %v275 = vrot.slane %v266, %v274
  %vm276 = vcmask 130048
  %v278 = vsel %vm276, %v270, 0
  %v281 = vsel %vm276, %v271, 0
  %283 = vmatprep.subr.mxu0 0.0
  %284 = vmatpush1.msra.mxu0 %v252
  %285 = vmatprep.subr.mxu0 0.0
  %286 = vmatpush1.msra.mxu0 %v253
  %287 = vmatprep.subr.mxu0 0.0
  %288 = vmatpush1.msra.mxu0 0.0
  %289 = vmatprep.subr.mxu0 0.0
  %290 = vmatpush1.msra.mxu0 0.0
  %291 = vmatprep.subr.mxu0 0.0
  %292 = vmatpush1.msra.mxu0 0.0
  %293 = vmatprep.subr.mxu0 0.0
  %294 = vmatpush1.msra.mxu0 0.0
  %295 = vmatprep.subr.mxu0 0.0
  %296 = vmatpush1.msra.mxu0 0.0
  %297 = vmatprep.subr.mxu0 0.0
  %298 = vmatpush1.msra.mxu0 0.0
  %299 = vmatprep.subr.mxu0 0.0
  %300 = vmatpush1.msra.mxu0 0.0
  %301 = vmatprep.subr.mxu0 0.0
  %302 = vmatpush1.msra.mxu0 0.0
  %303 = vmatprep.subr.mxu0 0.0
  %304 = vmatpush1.msra.mxu0 0.0
  %305 = vmatprep.subr.mxu0 0.0
  %306 = vmatpush1.msra.mxu0 0.0
  %307 = vmatprep.subr.mxu0 0.0
  %308 = vmatpush1.msra.mxu0 0.0
  %309 = vmatprep.subr.mxu0 0.0
  %310 = vmatpush1.msra.mxu0 0.0
  %311 = vmatprep.subr.mxu0 0.0
  %312 = vmatpush1.msra.mxu0 0.0
  %313 = vmatprep.subr.mxu0 0.0
  %314 = vmatpush1.msra.mxu0 0.0
  %315 = vmatprep.subr.mxu0 0.0
  %316 = vmatpush1.msra.mxu0 0.0
  %317 = vmatprep.subr.mxu0 0.0
  %318 = vmatpush1.msra.mxu0 0.0
  %319 = vmatprep.subr.mxu0 0.0
  %320 = vmatpush1.msra.mxu0 0.0
  %321 = vmatprep.subr.mxu0 0.0
  %322 = vmatpush1.msra.mxu0 0.0
  %323 = vmatprep.subr.mxu0 0.0
  %324 = vmatpush1.msra.mxu0 0.0
  %325 = vmatprep.subr.mxu0 0.0
  %326 = vmatpush1.msra.mxu0 0.0
  %327 = vmatprep.subr.mxu0 0.0
  %328 = vmatpush1.msra.mxu0 0.0
  %329 = vmatprep.subr.mxu0 0.0
  %330 = vmatpush1.msra.mxu0 0.0
  %331 = vmatprep.subr.mxu0 0.0
  %332 = vmatpush1.msra.mxu0 0.0
  %333 = vmatprep.subr.mxu0 0.0
  %334 = vmatpush1.msra.mxu0 0.0
  %335 = vmatprep.subr.mxu0 0.0
  %336 = vmatpush1.msra.mxu0 0.0
  %337 = vmatprep.subr.mxu0 0.0
  %338 = vmatpush1.msra.mxu0 0.0
  %339 = vmatprep.subr.mxu0 0.0
  %340 = vmatpush1.msra.mxu0 0.0
  %341 = vmatprep.subr.mxu0 0.0
  %342 = vmatpush1.msra.mxu0 0.0
  %343 = vmatprep.subr.mxu0 0.0
  %344 = vmatpush1.msra.mxu0 0.0
  %345 = vmatprep.subr.mxu0 0.0
  %346 = vmatpush1.msra.mxu0 0.0
  %347 = vmatprep.mubr.f32.mxu0 0.0
  %348 = vmatmul.mubr.f32.gmra.mrb[0].mxu0 %v278
  %v349 = vpop.f32.mrb[0].mxu0
  %v350 = vadd.f32 %v275, %v349
  %v351 = vpop.f32.mrb[0].mxu0
  %352 = vmatprep.mubr.f32.mxu0 0.0
  %353 = vmatmul.mubr.f32.gmra.mrb[0].mxu0 %v281
  %v354 = vpop.f32.mrb[0].mxu0
  %v355 = vadd.f32 %v275, %v354
  %v356 = vpop.f32.mrb[0].mxu0
  %357 = vdwg.mxu0
  %358 = vst [vmem:[%s6] sm:$0xff] %v350
  %359 = vst [vmem:[%s6 + $0x8] sm:$0xff] %v355
  // Predicated region
  $region26: #{bbox_spatial_embedding.1} parent=0 // pred_check
    _
  $region27: #{bbox_spatial_embedding.1} parent=0 // pred_check_branch
    %361 = sbr.rel (0) target = $region29
  $region28: #{bbox_spatial_embedding.1} parent=0 // pred_region
    _
  $region29: #{bbox_spatial_embedding.1} parent=0 // pred_fallthru
    _
  // Predicated region
  $region30: #{bbox_spatial_embedding.1} parent=0 // pred_check
    _
  $region31: #{bbox_spatial_embedding.1} parent=0 // pred_check_branch
    %363 = sbr.rel (0) target = $region33
  $region32: #{bbox_spatial_embedding.1} parent=0 // pred_region
    _
  $region33: #{bbox_spatial_embedding.1} parent=0 // pred_fallthru
    _

</llo_original>
